<compile_context>
chip_gen: v7x
topology: tpu7x:2x2x1
jax: 0.10.0
libtpu: 0.0.40
codegen_flags: <defaults>
</compile_context>

<pallas_src>
import jax
import jax.numpy as jnp
from jax.experimental import pallas as pl
from jax.experimental.pallas import tpu as pltpu

F_DIM = 256  # self.f_dim in the PyTorch module


def _feat2adj_kernel(x_ref, w_emb_ref, b_emb_ref, w_qk_ref, b_qk_ref,
                     wpp_ref, bpp_ref, o_ref):
    bb, n, f_in = x_ref.shape
    d = w_emb_ref.shape[1]            # 256
    f32 = jnp.float32
    bf16 = jnp.bfloat16

    # Stack the Bb batch elements into the matmul M dimension: (Bb*N, Fin).
    # (Layout-free: N is padded to the sublane multiple in the wrapper.)
    x = x_ref[...].reshape(bb * n, f_in)
    if x.dtype != bf16:               # accept bf16 inputs without a re-cast
        x = x.astype(bf16)

    # embedding: Linear(Fin, 256) + ReLU (bf16 MXU inputs, f32 accumulation).
    h = jnp.dot(x, w_emb_ref[...], preferred_element_type=f32)
    h = jnp.maximum(h + b_emb_ref[...], 0.0)             # (Bb*N, 256) f32
    hb = h.astype(bf16)

    # Fused query/key projection: one (Bb*N, 256) @ (256, 512) matmul.
    # Slices at 256 are lane-aligned (multiple of 128) -> layout-free.
    qk = jnp.dot(hb, w_qk_ref[...], preferred_element_type=f32) + b_qk_ref[...]
    q = qk[:, :d].reshape(bb, n, d)                       # (Bb, N, 256) f32
    k = qk[:, d:].reshape(bb, n, d)

    # Associativity rewrite adj = q @ (k^T @ w_pp^T), computed on VPU + XLU
    # (FLOPs are negligible) so these per-batch M=1 contractions do not
    # serialize behind the big MXU projections.
    wpp = wpp_ref[...][None]                              # (1, N, 1) f32
    kv = jnp.sum(k * wpp, axis=1, keepdims=True)          # (Bb, 1, 256)
    adj = jnp.sum(q * kv, axis=-1) + bpp_ref[...]         # (Bb, N) f32

    # One contiguous slab per grid block; wrapper restores (B, N, 1).
    o_ref[0] = adj.astype(o_ref.dtype)


def _chip_budget():
    """Per-generation block sizing.
    v7x: 64 MiB VMEM per TensorCore and 2 TCs -> smaller blocks, >=2 grid
    blocks. v5e/v6e: 128 MiB physical VMEM, 1 TC -> largest legal block; the
    default scoped VMEM limit (16/32 MiB) is raised explicitly."""
    try:
        vmem = int(getattr(pltpu.get_tpu_info(), "vmem_capacity_bytes",
                           128 << 20))
    except Exception:           # non-TPU backend / older runtime: be safe
        vmem = 128 << 20
    if vmem <= (64 << 20):      # v7x-class core
        return dict(max_rows=1024, vmem_limit=44 << 20, multi_tc=True)
    return dict(max_rows=4096, vmem_limit=80 << 20, multi_tc=False)


def _pick_block_batch(batch, node, max_rows, multi_tc):
    """Largest divisor Bb of `batch` with Bb*node <= max_rows, amortizing the
    ~0.35us per-grid-step cost. Only on multi-TensorCore chips (v7x) shrink
    the block so >= 2 grid blocks exist and both cores get work (on 1-TC
    v5e/v6e that would only add overhead)."""
    best = 1
    for bb in range(1, batch + 1):
        if batch % bb == 0 and bb * node <= max_rows:
            best = bb
    if multi_tc and batch >= 2 and batch // best < 2:
        for bb in range(best - 1, 0, -1):
            if batch % bb == 0 and batch // bb >= 2:
                return bb
    return best


def feature_to_adjacency(x, params, *, block_batch=None):
    """x: (B, N, Fin) float32 or bfloat16. Returns (B, N, 1) float32,
    matching the PyTorch module's output."""
    batch, node, f_in = x.shape
    budget = _chip_budget()

    # Pad the node dim to the sublane multiple so in-kernel reshapes stay
    # layout-free. Only costs an extra copy of x when N is ragged.
    mult = 16 if x.dtype == jnp.bfloat16 else 8
    node_p = -(-node // mult) * mult
    if node_p != node:
        x = jnp.pad(x, ((0, 0), (0, node_p - node), (0, 0)))

    # One-time weight prep (bf16 casts, fused W_q||W_k, w_pp column, padding).
    # In production cache these prepared arrays instead of rebuilding per call.
    bf16 = jnp.bfloat16
    w_emb = params["w_emb"].astype(bf16)                                 # (Fin, 256)
    w_qk = jnp.concatenate([params["w_q"], params["w_k"]], 1).astype(bf16)  # (256, 512)
    b_qk = jnp.concatenate([params["b_q"], params["b_k"]], 1)            # (1, 512)
    w_pp = params["w_pp"].reshape(node, 1).astype(jnp.float32)           # (N, 1)
    if node_p != node:
        w_pp = jnp.pad(w_pp, ((0, node_p - node), (0, 0)))               # zeros
    b_emb, b_pp = params["b_emb"], params["b_pp"]

    # TODO(synk): add a node-tiled (kv-accumulation) grid path for very large
    # N where a single (Bb, N, .) block would exceed v7x's 64 MiB VMEM.
    bb = (block_batch if block_batch is not None
          else _pick_block_batch(batch, node_p, budget["max_rows"],
                                 budget["multi_tc"]))
    assert batch % bb == 0, (batch, bb)
    num_blocks = batch // bb

    def rep(arr):
        nd = arr.ndim
        return pl.BlockSpec(arr.shape, lambda i, _nd=nd: (0,) * _nd)

    grid_spec = pltpu.PrefetchScalarGridSpec(
        num_scalar_prefetch=0,
        grid=(num_blocks,),
        in_specs=[
            pl.BlockSpec((bb, node_p, f_in), lambda i: (i, 0, 0)),   # x block
            rep(w_emb), rep(b_emb),
            rep(w_qk), rep(b_qk),
            rep(w_pp), rep(b_pp),
        ],
        out_specs=pl.BlockSpec((1, bb, node_p), lambda i: (i, 0, 0)),
    )

    adj = pl.pallas_call(
        _feat2adj_kernel,
        out_shape=jax.ShapeDtypeStruct((num_blocks, bb, node_p), jnp.float32),
        grid_spec=grid_spec,
        compiler_params=pltpu.CompilerParams(
            dimension_semantics=("parallel",),
            vmem_limit_bytes=budget["vmem_limit"]),
    )(x, w_emb, b_emb, w_qk, b_qk, w_pp, b_pp)

    # (num_blocks, Bb, N_pad) -> (B, N, 1): the module's output shape.
    return adj.reshape(batch, node_p)[:, :node, None]


def init_params(key, feature_size, node_size):
    """Synthetic init matching nn.Linear defaults. Projection weights stored
    as (in, out); pp weight in torch's native (1, N) layout."""
    ks = jax.random.split(key, 10)

    def lin(kw, kb, fan_in, fan_out, w_shape):
        bound = 1.0 / jnp.sqrt(fan_in)
        w = jax.random.uniform(kw, w_shape, jnp.float32, -bound, bound)
        b = jax.random.uniform(kb, (1, fan_out), jnp.float32, -bound, bound)
        return w, b

    w_emb, b_emb = lin(ks[0], ks[1], feature_size, F_DIM, (feature_size, F_DIM))
    w_q, b_q = lin(ks[2], ks[3], F_DIM, F_DIM, (F_DIM, F_DIM))
    w_k, b_k = lin(ks[4], ks[5], F_DIM, F_DIM, (F_DIM, F_DIM))
    # `value` exists in the module but is unused in forward; init for parity.
    w_v, b_v = lin(ks[6], ks[7], F_DIM, F_DIM, (F_DIM, F_DIM))
    w_pp, b_pp = lin(ks[8], ks[9], node_size, 1, (1, node_size))
    return dict(w_emb=w_emb, b_emb=b_emb, w_q=w_q, b_q=b_q, w_k=w_k, b_k=b_k,
                w_v=w_v, b_v=b_v, w_pp=w_pp, b_pp=b_pp)


def reference_forward_f32(x, p):
    """Full-f32 reference with the original op order (materializes attn)."""
    h = jnp.maximum(jnp.einsum("bnf,fd->bnd", x, p["w_emb"]) + p["b_emb"], 0.0)
    q = jnp.einsum("bnd,de->bne", h, p["w_q"]) + p["b_q"]
    k = jnp.einsum("bnd,de->bne", h, p["w_k"]) + p["b_k"]
    attn = jnp.einsum("bqd,bkd->bqk", q, k)
    adj = jnp.einsum("bqk,ok->bqo", attn, p["w_pp"]) + p["b_pp"]
    return adj  # (B, N, 1)


def reference_forward_mirror(x, p):
    """Reference mirroring the kernel's bf16 casts + associativity rewrite."""
    bf16, f32 = jnp.bfloat16, jnp.float32
    h = jnp.einsum("bnf,fd->bnd", x.astype(bf16), p["w_emb"].astype(bf16),
                   preferred_element_type=f32)
    h = jnp.maximum(h + p["b_emb"], 0.0)
    hb = h.astype(bf16)
    q = jnp.einsum("bnd,de->bne", hb, p["w_q"].astype(bf16),
                   preferred_element_type=f32) + p["b_q"]
    k = jnp.einsum("bnd,de->bne", hb, p["w_k"].astype(bf16),
                   preferred_element_type=f32) + p["b_k"]
    kv = jnp.einsum("on,bnd->bod", p["w_pp"], k)       # (B, 1, 256)
    adj = jnp.einsum("bod,bnd->bon", kv, q) + p["b_pp"]
    return jnp.transpose(adj, (0, 2, 1))               # (B, N, 1)


if __name__ == "__main__":
    batch = 2
    node_size = 8
    feature_size = 32

    key = jax.random.PRNGKey(0)
    k_x, k_p = jax.random.split(key)
    x = jax.random.normal(k_x, (batch, node_size, feature_size), jnp.float32)
    params = init_params(k_p, feature_size, node_size)

    out = feature_to_adjacency(x, params)
    out = jax.block_until_ready(out)
    assert out.shape == (batch, node_size, 1), out.shape

    # Tight check vs a reference mirroring the kernel's bf16 + associativity.
    ref_m = reference_forward_mirror(x, params)
    err_m = float(jnp.max(jnp.abs(out - ref_m)))
    assert jnp.allclose(out, ref_m, atol=2e-2, rtol=2e-2), err_m

    # Semantics check vs the full-f32, original-order reference (looser
    # tolerance accounts for the intentional bf16 MXU inputs).
    ref_f = reference_forward_f32(x, params)
    err_f = float(jnp.max(jnp.abs(out - ref_f)))
    assert jnp.allclose(out, ref_f, atol=1e-1, rtol=1e-1), err_f

    print("KERNEL_OK")
</pallas_src>

<mosaic_0001>
module attributes {stable_mosaic.version = 11 : i64} {
  func.func @_feat2adj_kernel(%arg0: i32, %arg1: memref<2x8x32xf32, #tpu.memory_space<vmem>>, %arg2: memref<32x256xbf16, #tpu.memory_space<vmem>>, %arg3: memref<1x256xf32, #tpu.memory_space<vmem>>, %arg4: memref<256x512xbf16, #tpu.memory_space<vmem>>, %arg5: memref<1x512xf32, #tpu.memory_space<vmem>>, %arg6: memref<8x1xf32, #tpu.memory_space<vmem>>, %arg7: memref<1x1xf32, #tpu.memory_space<vmem>>, %arg8: memref<1x2x8xf32, #tpu.memory_space<vmem>>) attributes {dimension_semantics = [#tpu.dimension_semantics<parallel>], iteration_bounds = array<i64: 1>, scalar_prefetch = 0 : i64, scratch_operands = 0 : i64, tpu.core_type = #tpu.core_type<tc>, window_params = [{transform_indices = @transform_0, window_bounds = array<i64: 2, 8, 32>}, {pipeline_mode = #tpu.pipeline_mode<synchronous>, transform_indices = @transform_1, window_bounds = array<i64: 32, 256>}, {pipeline_mode = #tpu.pipeline_mode<synchronous>, transform_indices = @transform_2, window_bounds = array<i64: 1, 256>}, {pipeline_mode = #tpu.pipeline_mode<synchronous>, transform_indices = @transform_3, window_bounds = array<i64: 256, 512>}, {pipeline_mode = #tpu.pipeline_mode<synchronous>, transform_indices = @transform_4, window_bounds = array<i64: 1, 512>}, {pipeline_mode = #tpu.pipeline_mode<synchronous>, transform_indices = @transform_5, window_bounds = array<i64: 8, 1>}, {pipeline_mode = #tpu.pipeline_mode<synchronous>, transform_indices = @transform_6, window_bounds = array<i64: 1, 1>}, {transform_indices = @transform_7, window_bounds = array<i64: 1, 2, 8>}]} {
    %c0 = arith.constant 0 : index
    %c0_0 = arith.constant 0 : index
    %c0_1 = arith.constant 0 : index
    %0 = vector.load %arg1[%c0, %c0_0, %c0_1] : memref<2x8x32xf32, #tpu.memory_space<vmem>>, vector<2x8x32xf32>
    %1 = vector.shape_cast %0 : vector<2x8x32xf32> to vector<16x32xf32>
    %2 = arith.truncf %1 : vector<16x32xf32> to vector<16x32xbf16>
    %c0_2 = arith.constant 0 : index
    %c0_3 = arith.constant 0 : index
    %3 = vector.load %arg2[%c0_2, %c0_3] : memref<32x256xbf16, #tpu.memory_space<vmem>>, vector<32x256xbf16>
    %cst = arith.constant dense<0.000000e+00> : vector<16x256xf32>
    %4 = tpu.matmul %2, %3, %cst {dimension_numbers = #tpu.dot_dimension_numbers<[1], [0], [0], [1], [0, 0, 1, 1], [], []>} : vector<16x32xbf16>, vector<32x256xbf16>, vector<16x256xf32> -> vector<16x256xf32>
    %c0_4 = arith.constant 0 : index
    %c0_5 = arith.constant 0 : index
    %5 = vector.load %arg3[%c0_4, %c0_5] : memref<1x256xf32, #tpu.memory_space<vmem>>, vector<1x256xf32>
    %6 = vector.broadcast %5 : vector<1x256xf32> to vector<16x256xf32>
    %7 = arith.addf %4, %6 : vector<16x256xf32>
    %cst_6 = arith.constant 0.000000e+00 : f32
    %8 = vector.broadcast %cst_6 : f32 to vector<16x256xf32>
    %9 = arith.maximumf %7, %8 : vector<16x256xf32>
    %10 = arith.truncf %9 : vector<16x256xf32> to vector<16x256xbf16>
    %c0_7 = arith.constant 0 : index
    %c0_8 = arith.constant 0 : index
    %11 = vector.load %arg4[%c0_7, %c0_8] : memref<256x512xbf16, #tpu.memory_space<vmem>>, vector<256x512xbf16>
    %cst_9 = arith.constant dense<0.000000e+00> : vector<16x512xf32>
    %12 = tpu.matmul %10, %11, %cst_9 {dimension_numbers = #tpu.dot_dimension_numbers<[1], [0], [0], [1], [0, 0, 1, 1], [], []>} : vector<16x256xbf16>, vector<256x512xbf16>, vector<16x512xf32> -> vector<16x512xf32>
    %c0_10 = arith.constant 0 : index
    %c0_11 = arith.constant 0 : index
    %13 = vector.load %arg5[%c0_10, %c0_11] : memref<1x512xf32, #tpu.memory_space<vmem>>, vector<1x512xf32>
    %14 = vector.broadcast %13 : vector<1x512xf32> to vector<16x512xf32>
    %15 = arith.addf %12, %14 : vector<16x512xf32>
    %16 = vector.extract_strided_slice %15 {offsets = [0, 0], sizes = [16, 256], strides = [1, 1]} : vector<16x512xf32> to vector<16x256xf32>
    %17 = vector.shape_cast %16 : vector<16x256xf32> to vector<2x8x256xf32>
    %18 = vector.extract_strided_slice %15 {offsets = [0, 256], sizes = [16, 256], strides = [1, 1]} : vector<16x512xf32> to vector<16x256xf32>
    %19 = vector.shape_cast %18 : vector<16x256xf32> to vector<2x8x256xf32>
    %c0_12 = arith.constant 0 : index
    %c0_13 = arith.constant 0 : index
    %20 = vector.load %arg6[%c0_12, %c0_13] : memref<8x1xf32, #tpu.memory_space<vmem>>, vector<8x1xf32>
    %21 = vector.shape_cast %20 : vector<8x1xf32> to vector<1x8x1xf32>
    %22 = vector.broadcast %21 : vector<1x8x1xf32> to vector<2x8x256xf32>
    %23 = arith.mulf %19, %22 : vector<2x8x256xf32>
    %cst_14 = arith.constant dense<0.000000e+00> : vector<2x256xf32>
    %24 = vector.multi_reduction <add>, %23, %cst_14 [1] : vector<2x8x256xf32> to vector<2x256xf32>
    %25 = vector.shape_cast %24 : vector<2x256xf32> to vector<2x1x256xf32>
    %26 = vector.broadcast %25 : vector<2x1x256xf32> to vector<2x8x256xf32>
    %27 = arith.mulf %17, %26 : vector<2x8x256xf32>
    %cst_15 = arith.constant dense<0.000000e+00> : vector<2x8xf32>
    %28 = vector.multi_reduction <add>, %27, %cst_15 [2] : vector<2x8x256xf32> to vector<2x8xf32>
    %c0_16 = arith.constant 0 : index
    %c0_17 = arith.constant 0 : index
    %29 = vector.load %arg7[%c0_16, %c0_17] : memref<1x1xf32, #tpu.memory_space<vmem>>, vector<1x1xf32>
    %30 = vector.broadcast %29 : vector<1x1xf32> to vector<2x8xf32>
    %31 = arith.addf %28, %30 : vector<2x8xf32>
    %c0_18 = arith.constant 0 : index
    %c0_19 = arith.constant 0 : index
    %c0_20 = arith.constant 0 : index
    %32 = vector.load %arg8[%c0_18, %c0_19, %c0_20] : memref<1x2x8xf32, #tpu.memory_space<vmem>>, vector<1x2x8xf32>
    %33 = vector.shape_cast %32 : vector<1x2x8xf32> to vector<2x8xf32>
    %34 = vector.shape_cast %31 : vector<2x8xf32> to vector<1x2x8xf32>
    tpu.vector_store %arg8[%c0_18, %c0_19, %c0_20], %34 {strides = array<i32>} : memref<1x2x8xf32, #tpu.memory_space<vmem>>, vector<1x2x8xf32>,
    return
  }
  func.func @transform_0(%arg0: i32) -> (i32, i32, i32) {
    %c0_i32 = arith.constant 0 : i32
    %c0_i32_0 = arith.constant 0 : i32
    %c0_i32_1 = arith.constant 0 : i32
    return %arg0, %c0_i32, %c0_i32_0 : i32, i32, i32
  }
  func.func @transform_1(%arg0: i32) -> (i32, i32) {
    %c0_i32 = arith.constant 0 : i32
    %c0_i32_0 = arith.constant 0 : i32
    %c0_i32_1 = arith.constant 0 : i32
    return %c0_i32, %c0_i32_0 : i32, i32
  }
  func.func @transform_2(%arg0: i32) -> (i32, i32) {
    %c0_i32 = arith.constant 0 : i32
    %c0_i32_0 = arith.constant 0 : i32
    %c0_i32_1 = arith.constant 0 : i32
    return %c0_i32, %c0_i32_0 : i32, i32
  }
  func.func @transform_3(%arg0: i32) -> (i32, i32) {
    %c0_i32 = arith.constant 0 : i32
    %c0_i32_0 = arith.constant 0 : i32
    %c0_i32_1 = arith.constant 0 : i32
    return %c0_i32, %c0_i32_0 : i32, i32
  }
  func.func @transform_4(%arg0: i32) -> (i32, i32) {
    %c0_i32 = arith.constant 0 : i32
    %c0_i32_0 = arith.constant 0 : i32
    %c0_i32_1 = arith.constant 0 : i32
    return %c0_i32, %c0_i32_0 : i32, i32
  }
  func.func @transform_5(%arg0: i32) -> (i32, i32) {
    %c0_i32 = arith.constant 0 : i32
    %c0_i32_0 = arith.constant 0 : i32
    %c0_i32_1 = arith.constant 0 : i32
    return %c0_i32, %c0_i32_0 : i32, i32
  }
  func.func @transform_6(%arg0: i32) -> (i32, i32) {
    %c0_i32 = arith.constant 0 : i32
    %c0_i32_0 = arith.constant 0 : i32
    %c0_i32_1 = arith.constant 0 : i32
    return %c0_i32, %c0_i32_0 : i32, i32
  }
  func.func @transform_7(%arg0: i32) -> (i32, i32, i32) {
    %c0_i32 = arith.constant 0 : i32
    %c0_i32_0 = arith.constant 0 : i32
    %c0_i32_1 = arith.constant 0 : i32
    return %arg0, %c0_i32, %c0_i32_0 : i32, i32, i32
  }
}

</mosaic_0001>

<llo_original>
// kernel: tpu_custom_call.1
$region0: #{tpu_custom_call.1}
  #allocation0 [shape = 'u32[]', space=smem, size = 0x4, offset = 0x4, fixed_abs, tag = 'smem constant byte address 0x4 - core index']
  #allocation1 [shape = 'u32[144,128]{1,0:T(1,128)}', space=vmem, size = 0x12000, scoped, tag = 'internal scratch']
  #allocation2 [shape = 'f32[1,1]{1,0:T(1,128)S(1)}', space=vmem, size = 0x200, scoped, tag = 'scoped memory for tpu_custom_call.1']
  %s0 = inlined_call_operand.hbm [shape: f32[2,8,32], index: 0, kind: input, shape index: {}]
  %s1 = inlined_call_operand.hbm [shape: bf16[32,256], index: 1, kind: input, shape index: {}]
  %s2 = inlined_call_operand.hbm [shape: f32[1,256], index: 2, kind: input, shape index: {}]
  %s3 = inlined_call_operand.hbm [shape: bf16[256,512], index: 3, kind: input, shape index: {}]
  %s4 = inlined_call_operand.hbm [shape: f32[1,512], index: 4, kind: input, shape index: {}]
  %s5 = inlined_call_operand.hbm [shape: f32[8,1], index: 5, kind: input, shape index: {}]
  %s6 = inlined_call_operand.<no memory space> [shape: f32[1,1], index: 6, kind: input, shape index: {}]
  %s7 = inlined_call_operand.hbm [shape: f32[1,2,8], index: 7, kind: output, shape index: {}]
  %s8 = sld [smem:[#allocation0]]
  $region62: #{tpu_custom_call.1} parent=0
    _
  %s10 = ssub.s32 1, %s8
  %s11 = scalar_select 0, %s10, %s8
  %v12 = vstv %s6
  %13 = vst [vmem:[#allocation2] sm:$0x1] %v12
  $region1: #{tpu_custom_call.1} parent=0
    #allocation3 [shape = 'u8[8192]{0}', space=vmem, size = 0x2000, scoped, tag = 'input window, operand 0, single buffered']
    #allocation4 [shape = 's32[1]{0}', space=sflag, size = 0x4, scoped, tag = 'scoped memory for tpu_custom_call.1']
    #allocation5 [shape = 's32[1]{0}', space=sflag, size = 0x4, scoped, tag = 'scoped memory for tpu_custom_call.1']
    #allocation6 [shape = 'u8[16384]{0}', space=vmem, size = 0x4000, scoped, tag = 'input window, operand 1, single buffered']
    #allocation7 [shape = 's32[1]{0}', space=sflag, size = 0x4, scoped, tag = 'scoped memory for tpu_custom_call.1']
    #allocation8 [shape = 'u8[1024]{0}', space=vmem, size = 0x400, scoped, tag = 'input window, operand 2, single buffered']
    #allocation9 [shape = 'u8[262144]{0}', space=vmem, size = 0x40000, scoped, tag = 'input window, operand 3, single buffered']
    #allocation10 [shape = 's32[1]{0}', space=sflag, size = 0x4, scoped, tag = 'scoped memory for tpu_custom_call.1']
    #allocation11 [shape = 'u8[2048]{0}', space=vmem, size = 0x800, scoped, tag = 'input window, operand 4, single buffered']
    #allocation12 [shape = 'u8[4096]{0}', space=vmem, size = 0x1000, scoped, tag = 'input window, operand 5, single buffered']
    #allocation13 [shape = 's32[1]{0}', space=sflag, size = 0x4, scoped, tag = 'scoped memory for tpu_custom_call.1']
    #allocation14 [shape = 'u8[1024]{0}', space=vmem, size = 0x400, scoped, tag = 'output window, operand 0, single buffered']
    %14 = vsyncpa [#allocation4], 0
    %15 = vsyncpa [#allocation7], 0
    %16 = vsyncpa [#allocation10], 0
    %17 = vsyncpa [#allocation13], 0
    %18 = vsyncpa [#allocation5], 0
    // Predicated region
    $region2: #{tpu_custom_call.1} parent=1 // pred_check
      _
    $region3: #{tpu_custom_call.1} parent=1 // pred_check_branch
      %20 = sbr.rel (0) target = $region5
    $region4: #{tpu_custom_call.1} parent=1 // pred_region
      %s22 = ssub.s32 256, 256
      %23 = vsyncadd [#allocation4], %s22
      %s24 = sshll.u32 [#allocation3], 4
      %s25 = int_to_ptr.vmem [resolvable:$true] %s24
      %30 = dma.hbm_to_vmem [thread:$0]  %s0, 256, %s25, [#allocation4], 128, 128, 8
    $region5: #{tpu_custom_call.1} parent=1 // pred_fallthru
      _
    // Predicated region
    $region6: #{tpu_custom_call.1} parent=1 // pred_check
      _
    $region7: #{tpu_custom_call.1} parent=1 // pred_check_branch
      %32 = sbr.rel (0) target = $region9
    $region8: #{tpu_custom_call.1} parent=1 // pred_region
      %s34 = ssub.s32 512, 512
      %35 = vsyncadd [#allocation7], %s34
      %s36 = sshll.u32 [#allocation6], 4
      %s37 = int_to_ptr.vmem [resolvable:$true] %s36
      %42 = dma.hbm_to_vmem [thread:$0]  %s1, 512, %s37, [#allocation7], 128, 128, 8
    $region9: #{tpu_custom_call.1} parent=1 // pred_fallthru
      _
    // Predicated region
    $region10: #{tpu_custom_call.1} parent=1 // pred_check
      _
    $region11: #{tpu_custom_call.1} parent=1 // pred_check_branch
      %44 = sbr.rel (0) target = $region13
    $region12: #{tpu_custom_call.1} parent=1 // pred_region
      %s46 = ssub.s32 32, 32
      %47 = vsyncadd [#allocation7], %s46
      %s49 = sshll.u32 [#allocation8], 4
      %s50 = int_to_ptr.vmem [resolvable:$true] %s49
      %52 = dma.hbm_to_vmem [thread:$0]  %s2, 32, %s50, [#allocation7]
    $region13: #{tpu_custom_call.1} parent=1 // pred_fallthru
      _
    // Predicated region
    $region14: #{tpu_custom_call.1} parent=1 // pred_check
      _
    $region15: #{tpu_custom_call.1} parent=1 // pred_check_branch
      %54 = sbr.rel (0) target = $region17
    $region16: #{tpu_custom_call.1} parent=1 // pred_region
      %s56 = ssub.s32 8192, 8192
      %57 = vsyncadd [#allocation10], %s56
      %s58 = sshll.u32 [#allocation9], 4
      %s59 = int_to_ptr.vmem [resolvable:$true] %s58
      %64 = dma.hbm_to_vmem [thread:$0]  %s3, 8192, %s59, [#allocation10], 256, 256, 16
    $region17: #{tpu_custom_call.1} parent=1 // pred_fallthru
      _
    // Predicated region
    $region18: #{tpu_custom_call.1} parent=1 // pred_check
      _
    $region19: #{tpu_custom_call.1} parent=1 // pred_check_branch
      %66 = sbr.rel (0) target = $region21
    $region20: #{tpu_custom_call.1} parent=1 // pred_region
      %s68 = ssub.s32 64, 64
      %69 = vsyncadd [#allocation10], %s68
      %s71 = sshll.u32 [#allocation11], 4
      %s72 = int_to_ptr.vmem [resolvable:$true] %s71
      %74 = dma.hbm_to_vmem [thread:$0]  %s4, 64, %s72, [#allocation10]
    $region21: #{tpu_custom_call.1} parent=1 // pred_fallthru
      _
    // Predicated region
    $region22: #{tpu_custom_call.1} parent=1 // pred_check
      _
    $region23: #{tpu_custom_call.1} parent=1 // pred_check_branch
      %76 = sbr.rel (0) target = $region25
    $region24: #{tpu_custom_call.1} parent=1 // pred_region
      %s78 = ssub.s32 128, 128
      %79 = vsyncadd [#allocation13], %s78
      %s81 = sshll.u32 [#allocation12], 4
      %s82 = int_to_ptr.vmem [resolvable:$true] %s81
      %84 = dma.hbm_to_vmem [thread:$0]  %s5, 128, %s82, [#allocation13]
    $region25: #{tpu_custom_call.1} parent=1 // pred_fallthru
      _
    // Predicated region
    $region26: #{tpu_custom_call.1} parent=1 // pred_check
      _
    $region27: #{tpu_custom_call.1} parent=1 // pred_check_branch
      %86 = sbr.rel (0) target = $region29
    $region28: #{tpu_custom_call.1} parent=1 // pred_region
      _
    $region29: #{tpu_custom_call.1} parent=1 // pred_fallthru
      _
    // Predicated region
    $region30: #{tpu_custom_call.1} parent=1 // pred_check
      _
    $region31: #{tpu_custom_call.1} parent=1 // pred_check_branch
      %88 = sbr.rel (0) target = $region33
    $region32: #{tpu_custom_call.1} parent=1 // pred_region
      %89 = dma.done [#allocation4], 256
    $region33: #{tpu_custom_call.1} parent=1 // pred_fallthru
      _
    // Predicated region
    $region34: #{tpu_custom_call.1} parent=1 // pred_check
      _
    $region35: #{tpu_custom_call.1} parent=1 // pred_check_branch
      %91 = sbr.rel (0) target = $region37
    $region36: #{tpu_custom_call.1} parent=1 // pred_region
      %92 = dma.done [#allocation7], 512
    $region37: #{tpu_custom_call.1} parent=1 // pred_fallthru
      _
    // Predicated region
    $region38: #{tpu_custom_call.1} parent=1 // pred_check
      _
    $region39: #{tpu_custom_call.1} parent=1 // pred_check_branch
      %94 = sbr.rel (0) target = $region41
    $region40: #{tpu_custom_call.1} parent=1 // pred_region
      %95 = dma.done [#allocation7], 32
    $region41: #{tpu_custom_call.1} parent=1 // pred_fallthru
      _
    // Predicated region
    $region42: #{tpu_custom_call.1} parent=1 // pred_check
      _
    $region43: #{tpu_custom_call.1} parent=1 // pred_check_branch
      %97 = sbr.rel (0) target = $region45
    $region44: #{tpu_custom_call.1} parent=1 // pred_region
      %98 = dma.done [#allocation10], 8192
    $region45: #{tpu_custom_call.1} parent=1 // pred_fallthru
      _
    // Predicated region
    $region46: #{tpu_custom_call.1} parent=1 // pred_check
      _
    $region47: #{tpu_custom_call.1} parent=1 // pred_check_branch
      %100 = sbr.rel (0) target = $region49
    $region48: #{tpu_custom_call.1} parent=1 // pred_region
      %101 = dma.done [#allocation10], 64
    $region49: #{tpu_custom_call.1} parent=1 // pred_fallthru
      _
    // Predicated region
    $region50: #{tpu_custom_call.1} parent=1 // pred_check
      _
    $region51: #{tpu_custom_call.1} parent=1 // pred_check_branch
      %103 = sbr.rel (0) target = $region53
    $region52: #{tpu_custom_call.1} parent=1 // pred_region
      %104 = dma.done [#allocation13], 128
    $region53: #{tpu_custom_call.1} parent=1 // pred_fallthru
      _
    %v106 = vld [vmem:[#allocation3] sm:$0xff]
    %v107 = vld [vmem:[#allocation3 + $0x8] sm:$0xff]
    %v108 = vpack.c.bf16 %v107, %v106
    %v109 = vld [vmem:[#allocation6] sm:$0xff]
    %v110 = vld [vmem:[#allocation6 + $0x8] sm:$0xff]
    %v111 = vld [vmem:[#allocation6 + $0x10] sm:$0xff]
    %v112 = vld [vmem:[#allocation6 + $0x18] sm:$0xff]
    %v113 = vld [vmem:[#allocation8] sm:$0x3]
    %v115 = vlaneseq
    %v116 = vshrl.u32 %v115, 7
    %v117 = vsub.s32 0, %v116
    %v118 = vrot.slane %v113, %v117
    %v119 = vlaneseq
    %v120 = vshrl.u32 %v119, 7
    %v121 = vsub.s32 1, %v120
    %v122 = vrot.slane %v113, %v121
    %v129 = vunpack.c.l.b16 %v109
    %v130 = vunpack.c.h.b16 %v109
    %v131 = vunpack.c.l.b16 %v110
    %v132 = vunpack.c.h.b16 %v110
    %v133 = vunpack.c.l.b16 %v111
    %v134 = vunpack.c.h.b16 %v111
    %v135 = vunpack.c.l.b16 %v112
    %v136 = vunpack.c.h.b16 %v112
    %v137 = vpack.c.b16 %v131, %v129
    %v138 = vpack.c.b16 %v132, %v130
    %v139 = vpack.c.b16 %v135, %v133
    %v140 = vpack.c.b16 %v136, %v134
    %vm145 = vcmask 261120
    %v147 = vsel %vm145, %v108, 0
    %149 = vmatprep.subr.bf16.mxu0 %v138
    %150 = vmatpush1.bf16.msra.mxu0 %v137
    %151 = vmatprep.subr.bf16.mxu0 %v140
    %152 = vmatpush1.bf16.msra.mxu0 %v139
    %153 = vmatprep.subr.bf16.mxu0 0
    %154 = vmatpush1.bf16.msra.mxu0 0
    %155 = vmatprep.subr.bf16.mxu0 0
    %156 = vmatpush1.bf16.msra.mxu0 0
    %157 = vmatprep.subr.bf16.mxu0 0
    %158 = vmatpush1.bf16.msra.mxu0 0
    %159 = vmatprep.subr.bf16.mxu0 0
    %160 = vmatpush1.bf16.msra.mxu0 0
    %161 = vmatprep.subr.bf16.mxu0 0
    %162 = vmatpush1.bf16.msra.mxu0 0
    %163 = vmatprep.subr.bf16.mxu0 0
    %164 = vmatpush1.bf16.msra.mxu0 0
    %165 = vmatprep.subr.bf16.mxu0 0
    %166 = vmatpush1.bf16.msra.mxu0 0
    %167 = vmatprep.subr.bf16.mxu0 0
    %168 = vmatpush1.bf16.msra.mxu0 0
    %169 = vmatprep.subr.bf16.mxu0 0
    %170 = vmatpush1.bf16.msra.mxu0 0
    %171 = vmatprep.subr.bf16.mxu0 0
    %172 = vmatpush1.bf16.msra.mxu0 0
    %173 = vmatprep.subr.bf16.mxu0 0
    %174 = vmatpush1.bf16.msra.mxu0 0
    %175 = vmatprep.subr.bf16.mxu0 0
    %176 = vmatpush1.bf16.msra.mxu0 0
    %177 = vmatprep.subr.bf16.mxu0 0
    %178 = vmatpush1.bf16.msra.mxu0 0
    %179 = vmatprep.subr.bf16.mxu0 0
    %180 = vmatpush1.bf16.msra.mxu0 0
    %181 = vmatprep.mubr.bf16.mxu0 0
    %182 = vmatmul.mubr.bf16.gmra.mrb[0].mxu0 %v147
    %v183 = vpop.f32.mrb[0].mxu0
    %v184 = vadd.f32 %v118, %v183
    %v185 = vpop.f32.mrb[0].mxu0
    %v186 = vadd.f32 %v122, %v185
    %v187 = vpop.f32.mrb[0].mxu0
    %v188 = vadd.f32 %v118, %v187
    %v189 = vpop.f32.mrb[0].mxu0
    %v190 = vadd.f32 %v122, %v189
    %191 = vdwg.mxu0
    %v192 = vmax.f32 %v184, 0.0
    %v193 = vmax.f32 %v186, 0.0
    %v194 = vmax.f32 %v188, 0.0
    %v195 = vmax.f32 %v190, 0.0
    %v196 = vpack.c.bf16 %v194, %v192
    %v197 = vpack.c.bf16 %v195, %v193
    %v198 = vld [vmem:[#allocation9] sm:$0xff]
    %v199 = vld [vmem:[#allocation9 + $0x8] sm:$0xff]
    %v200 = vld [vmem:[#allocation9 + $0x10] sm:$0xff]
    %v201 = vld [vmem:[#allocation9 + $0x18] sm:$0xff]
    %v202 = vld [vmem:[#allocation9 + $0x20] sm:$0xff]
    %v203 = vld [vmem:[#allocation9 + $0x28] sm:$0xff]
    %v204 = vld [vmem:[#allocation9 + $0x30] sm:$0xff]
    %v205 = vld [vmem:[#allocation9 + $0x38] sm:$0xff]
    %v206 = vld [vmem:[#allocation9 + $0x40] sm:$0xff]
    %v207 = vld [vmem:[#allocation9 + $0x48] sm:$0xff]
    %v208 = vld [vmem:[#allocation9 + $0x50] sm:$0xff]
    %v209 = vld [vmem:[#allocation9 + $0x58] sm:$0xff]
    %v210 = vld [vmem:[#allocation9 + $0x60] sm:$0xff]
    %v211 = vld [vmem:[#allocation9 + $0x68] sm:$0xff]
    %v212 = vld [vmem:[#allocation9 + $0x70] sm:$0xff]
    %v213 = vld [vmem:[#allocation9 + $0x78] sm:$0xff]
    %v214 = vld [vmem:[#allocation9 + $0x80] sm:$0xff]
    %v215 = vld [vmem:[#allocation9 + $0x88] sm:$0xff]
    %v216 = vld [vmem:[#allocation9 + $0x90] sm:$0xff]
    %v217 = vld [vmem:[#allocation9 + $0x98] sm:$0xff]
    %v218 = vld [vmem:[#allocation9 + $0xa0] sm:$0xff]
    %v219 = vld [vmem:[#allocation9 + $0xa8] sm:$0xff]
    %v220 = vld [vmem:[#allocation9 + $0xb0] sm:$0xff]
    %v221 = vld [vmem:[#allocation9 + $0xb8] sm:$0xff]
    %v222 = vld [vmem:[#allocation9 + $0xc0] sm:$0xff]
    %v223 = vld [vmem:[#allocation9 + $0xc8] sm:$0xff]
    %v224 = vld [vmem:[#allocation9 + $0xd0] sm:$0xff]
    %v225 = vld [vmem:[#allocation9 + $0xd8] sm:$0xff]
    %v226 = vld [vmem:[#allocation9 + $0xe0] sm:$0xff]
    %v227 = vld [vmem:[#allocation9 + $0xe8] sm:$0xff]
    %v228 = vld [vmem:[#allocation9 + $0xf0] sm:$0xff]
    %v229 = vld [vmem:[#allocation9 + $0xf8] sm:$0xff]
    %v230 = vld [vmem:[#allocation9 + $0x100] sm:$0xff]
    %v231 = vld [vmem:[#allocation9 + $0x108] sm:$0xff]
    %v232 = vld [vmem:[#allocation9 + $0x110] sm:$0xff]
    %v233 = vld [vmem:[#allocation9 + $0x118] sm:$0xff]
    %v234 = vld [vmem:[#allocation9 + $0x120] sm:$0xff]
    %v235 = vld [vmem:[#allocation9 + $0x128] sm:$0xff]
    %v236 = vld [vmem:[#allocation9 + $0x130] sm:$0xff]
    %v237 = vld [vmem:[#allocation9 + $0x138] sm:$0xff]
    %v238 = vld [vmem:[#allocation9 + $0x140] sm:$0xff]
    %v239 = vld [vmem:[#allocation9 + $0x148] sm:$0xff]
    %v240 = vld [vmem:[#allocation9 + $0x150] sm:$0xff]
    %v241 = vld [vmem:[#allocation9 + $0x158] sm:$0xff]
    %v242 = vld [vmem:[#allocation9 + $0x160] sm:$0xff]
    %v243 = vld [vmem:[#allocation9 + $0x168] sm:$0xff]
    %v244 = vld [vmem:[#allocation9 + $0x170] sm:$0xff]
    %v245 = vld [vmem:[#allocation9 + $0x178] sm:$0xff]
    %v246 = vld [vmem:[#allocation9 + $0x180] sm:$0xff]
    %v247 = vld [vmem:[#allocation9 + $0x188] sm:$0xff]
    %v248 = vld [vmem:[#allocation9 + $0x190] sm:$0xff]
    %v249 = vld [vmem:[#allocation9 + $0x198] sm:$0xff]
    %v250 = vld [vmem:[#allocation9 + $0x1a0] sm:$0xff]
    %v251 = vld [vmem:[#allocation9 + $0x1a8] sm:$0xff]
    %v252 = vld [vmem:[#allocation9 + $0x1b0] sm:$0xff]
    %v253 = vld [vmem:[#allocation9 + $0x1b8] sm:$0xff]
    %v254 = vld [vmem:[#allocation9 + $0x1c0] sm:$0xff]
    %v255 = vld [vmem:[#allocation9 + $0x1c8] sm:$0xff]
    %v256 = vld [vmem:[#allocation9 + $0x1d0] sm:$0xff]
    %v257 = vld [vmem:[#allocation9 + $0x1d8] sm:$0xff]
    %v258 = vld [vmem:[#allocation9 + $0x1e0] sm:$0xff]
    %v259 = vld [vmem:[#allocation9 + $0x1e8] sm:$0xff]
    %v260 = vld [vmem:[#allocation9 + $0x1f0] sm:$0xff]
    %v261 = vld [vmem:[#allocation9 + $0x1f8] sm:$0xff]
    %v262 = vld [vmem:[#allocation11] sm:$0xf]
    %v264 = vlaneseq
    %v265 = vshrl.u32 %v264, 7
    %v266 = vsub.s32 0, %v265
    %v267 = vrot.slane %v262, %v266
    %v268 = vlaneseq
    %v269 = vshrl.u32 %v268, 7
    %v270 = vsub.s32 1, %v269
    %v271 = vrot.slane %v262, %v270
    %v272 = vlaneseq
    %v273 = vshrl.u32 %v272, 7
    %v274 = vsub.s32 2, %v273
    %v275 = vrot.slane %v262, %v274
    %v276 = vlaneseq
    %v277 = vshrl.u32 %v276, 7
    %v278 = vsub.s32 3, %v277
    %v279 = vrot.slane %v262, %v278
    %v348 = vunpack.c.l.b16 %v198
    %v349 = vunpack.c.h.b16 %v198
    %v350 = vunpack.c.l.b16 %v199
    %v351 = vunpack.c.h.b16 %v199
    %v352 = vunpack.c.l.b16 %v200
    %v353 = vunpack.c.h.b16 %v200
    %v354 = vunpack.c.l.b16 %v201
    %v355 = vunpack.c.h.b16 %v201
    %v356 = vunpack.c.l.b16 %v202
    %v357 = vunpack.c.h.b16 %v202
    %v358 = vunpack.c.l.b16 %v203
    %v359 = vunpack.c.h.b16 %v203
    %v360 = vunpack.c.l.b16 %v204
    %v361 = vunpack.c.h.b16 %v204
    %v362 = vunpack.c.l.b16 %v205
    %v363 = vunpack.c.h.b16 %v205
    %v364 = vunpack.c.l.b16 %v206
    %v365 = vunpack.c.h.b16 %v206
    %v366 = vunpack.c.l.b16 %v207
    %v367 = vunpack.c.h.b16 %v207
    %v368 = vunpack.c.l.b16 %v208
    %v369 = vunpack.c.h.b16 %v208
    %v370 = vunpack.c.l.b16 %v209
    %v371 = vunpack.c.h.b16 %v209
    %v372 = vunpack.c.l.b16 %v210
    %v373 = vunpack.c.h.b16 %v210
    %v374 = vunpack.c.l.b16 %v211
    %v375 = vunpack.c.h.b16 %v211
    %v376 = vunpack.c.l.b16 %v212
    %v377 = vunpack.c.h.b16 %v212
    %v378 = vunpack.c.l.b16 %v213
    %v379 = vunpack.c.h.b16 %v213
    %v380 = vunpack.c.l.b16 %v214
    %v381 = vunpack.c.h.b16 %v214
    %v382 = vunpack.c.l.b16 %v215
    %v383 = vunpack.c.h.b16 %v215
    %v384 = vunpack.c.l.b16 %v216
    %v385 = vunpack.c.h.b16 %v216
    %v386 = vunpack.c.l.b16 %v217
    %v387 = vunpack.c.h.b16 %v217
    %v388 = vunpack.c.l.b16 %v218
    %v389 = vunpack.c.h.b16 %v218
    %v390 = vunpack.c.l.b16 %v219
    %v391 = vunpack.c.h.b16 %v219
    %v392 = vunpack.c.l.b16 %v220
    %v393 = vunpack.c.h.b16 %v220
    %v394 = vunpack.c.l.b16 %v221
    %v395 = vunpack.c.h.b16 %v221
    %v396 = vunpack.c.l.b16 %v222
    %v397 = vunpack.c.h.b16 %v222
    %v398 = vunpack.c.l.b16 %v223
    %v399 = vunpack.c.h.b16 %v223
    %v400 = vunpack.c.l.b16 %v224
    %v401 = vunpack.c.h.b16 %v224
    %v402 = vunpack.c.l.b16 %v225
    %v403 = vunpack.c.h.b16 %v225
    %v404 = vunpack.c.l.b16 %v226
    %v405 = vunpack.c.h.b16 %v226
    %v406 = vunpack.c.l.b16 %v227
    %v407 = vunpack.c.h.b16 %v227
    %v408 = vunpack.c.l.b16 %v228
    %v409 = vunpack.c.h.b16 %v228
    %v410 = vunpack.c.l.b16 %v229
    %v411 = vunpack.c.h.b16 %v229
    %v412 = vunpack.c.l.b16 %v230
    %v413 = vunpack.c.h.b16 %v230
    %v414 = vunpack.c.l.b16 %v231
    %v415 = vunpack.c.h.b16 %v231
    %v416 = vunpack.c.l.b16 %v232
    %v417 = vunpack.c.h.b16 %v232
    %v418 = vunpack.c.l.b16 %v233
    %v419 = vunpack.c.h.b16 %v233
    %v420 = vunpack.c.l.b16 %v234
    %v421 = vunpack.c.h.b16 %v234
    %v422 = vunpack.c.l.b16 %v235
    %v423 = vunpack.c.h.b16 %v235
    %v424 = vunpack.c.l.b16 %v236
    %v425 = vunpack.c.h.b16 %v236
    %v426 = vunpack.c.l.b16 %v237
    %v427 = vunpack.c.h.b16 %v237
    %v428 = vunpack.c.l.b16 %v238
    %v429 = vunpack.c.h.b16 %v238
    %v430 = vunpack.c.l.b16 %v239
    %v431 = vunpack.c.h.b16 %v239
    %v432 = vunpack.c.l.b16 %v240
    %v433 = vunpack.c.h.b16 %v240
    %v434 = vunpack.c.l.b16 %v241
    %v435 = vunpack.c.h.b16 %v241
    %v436 = vunpack.c.l.b16 %v242
    %v437 = vunpack.c.h.b16 %v242
    %v438 = vunpack.c.l.b16 %v243
    %v439 = vunpack.c.h.b16 %v243
    %v440 = vunpack.c.l.b16 %v244
    %v441 = vunpack.c.h.b16 %v244
    %v442 = vunpack.c.l.b16 %v245
    %v443 = vunpack.c.h.b16 %v245
    %v444 = vunpack.c.l.b16 %v246
    %v445 = vunpack.c.h.b16 %v246
    %v446 = vunpack.c.l.b16 %v247
    %v447 = vunpack.c.h.b16 %v247
    %v448 = vunpack.c.l.b16 %v248
    %v449 = vunpack.c.h.b16 %v248
    %v450 = vunpack.c.l.b16 %v249
    %v451 = vunpack.c.h.b16 %v249
    %v452 = vunpack.c.l.b16 %v250
    %v453 = vunpack.c.h.b16 %v250
    %v454 = vunpack.c.l.b16 %v251
    %v455 = vunpack.c.h.b16 %v251
    %v456 = vunpack.c.l.b16 %v252
    %v457 = vunpack.c.h.b16 %v252
    %v458 = vunpack.c.l.b16 %v253
    %v459 = vunpack.c.h.b16 %v253
    %v460 = vunpack.c.l.b16 %v254
    %v461 = vunpack.c.h.b16 %v254
    %v462 = vunpack.c.l.b16 %v255
    %v463 = vunpack.c.h.b16 %v255
    %v464 = vunpack.c.l.b16 %v256
    %v465 = vunpack.c.h.b16 %v256
    %v466 = vunpack.c.l.b16 %v257
    %v467 = vunpack.c.h.b16 %v257
    %v468 = vunpack.c.l.b16 %v258
    %v469 = vunpack.c.h.b16 %v258
    %v470 = vunpack.c.l.b16 %v259
    %v471 = vunpack.c.h.b16 %v259
    %v472 = vunpack.c.l.b16 %v260
    %v473 = vunpack.c.h.b16 %v260
    %v474 = vunpack.c.l.b16 %v261
    %v475 = vunpack.c.h.b16 %v261
    %v476 = vpack.c.b16 %v352, %v348
    %v477 = vpack.c.b16 %v353, %v349
    %v478 = vpack.c.b16 %v354, %v350
    %v479 = vpack.c.b16 %v355, %v351
    %v480 = vpack.c.b16 %v360, %v356
    %v481 = vpack.c.b16 %v361, %v357
    %v482 = vpack.c.b16 %v362, %v358
    %v483 = vpack.c.b16 %v363, %v359
    %v484 = vpack.c.b16 %v368, %v364
    %v485 = vpack.c.b16 %v369, %v365
    %v486 = vpack.c.b16 %v370, %v366
    %v487 = vpack.c.b16 %v371, %v367
    %v488 = vpack.c.b16 %v376, %v372
    %v489 = vpack.c.b16 %v377, %v373
    %v490 = vpack.c.b16 %v378, %v374
    %v491 = vpack.c.b16 %v379, %v375
    %v492 = vpack.c.b16 %v384, %v380
    %v493 = vpack.c.b16 %v385, %v381
    %v494 = vpack.c.b16 %v386, %v382
    %v495 = vpack.c.b16 %v387, %v383
    %v496 = vpack.c.b16 %v392, %v388
    %v497 = vpack.c.b16 %v393, %v389
    %v498 = vpack.c.b16 %v394, %v390
    %v499 = vpack.c.b16 %v395, %v391
    %v500 = vpack.c.b16 %v400, %v396
    %v501 = vpack.c.b16 %v401, %v397
    %v502 = vpack.c.b16 %v402, %v398
    %v503 = vpack.c.b16 %v403, %v399
    %v504 = vpack.c.b16 %v408, %v404
    %v505 = vpack.c.b16 %v409, %v405
    %v506 = vpack.c.b16 %v410, %v406
    %v507 = vpack.c.b16 %v411, %v407
    %v508 = vpack.c.b16 %v416, %v412
    %v509 = vpack.c.b16 %v417, %v413
    %v510 = vpack.c.b16 %v418, %v414
    %v511 = vpack.c.b16 %v419, %v415
    %v512 = vpack.c.b16 %v424, %v420
    %v513 = vpack.c.b16 %v425, %v421
    %v514 = vpack.c.b16 %v426, %v422
    %v515 = vpack.c.b16 %v427, %v423
    %v516 = vpack.c.b16 %v432, %v428
    %v517 = vpack.c.b16 %v433, %v429
    %v518 = vpack.c.b16 %v434, %v430
    %v519 = vpack.c.b16 %v435, %v431
    %v520 = vpack.c.b16 %v440, %v436
    %v521 = vpack.c.b16 %v441, %v437
    %v522 = vpack.c.b16 %v442, %v438
    %v523 = vpack.c.b16 %v443, %v439
    %v524 = vpack.c.b16 %v448, %v444
    %v525 = vpack.c.b16 %v449, %v445
    %v526 = vpack.c.b16 %v450, %v446
    %v527 = vpack.c.b16 %v451, %v447
    %v528 = vpack.c.b16 %v456, %v452
    %v529 = vpack.c.b16 %v457, %v453
    %v530 = vpack.c.b16 %v458, %v454
    %v531 = vpack.c.b16 %v459, %v455
    %v532 = vpack.c.b16 %v464, %v460
    %v533 = vpack.c.b16 %v465, %v461
    %v534 = vpack.c.b16 %v466, %v462
    %v535 = vpack.c.b16 %v467, %v463
    %v536 = vpack.c.b16 %v472, %v468
    %v537 = vpack.c.b16 %v473, %v469
    %v538 = vpack.c.b16 %v474, %v470
    %v539 = vpack.c.b16 %v475, %v471
    %604 = vmatprep.subr.bf16.mxu0 %v477
    %605 = vmatpush1.bf16.msra.mxu0 %v476
    %606 = vmatprep.subr.bf16.mxu0 %v481
    %607 = vmatpush1.bf16.msra.mxu0 %v480
    %608 = vmatprep.subr.bf16.mxu0 %v485
    %609 = vmatpush1.bf16.msra.mxu0 %v484
    %610 = vmatprep.subr.bf16.mxu0 %v489
    %611 = vmatpush1.bf16.msra.mxu0 %v488
    %612 = vmatprep.subr.bf16.mxu0 %v493
    %613 = vmatpush1.bf16.msra.mxu0 %v492
    %614 = vmatprep.subr.bf16.mxu0 %v497
    %615 = vmatpush1.bf16.msra.mxu0 %v496
    %616 = vmatprep.subr.bf16.mxu0 %v501
    %617 = vmatpush1.bf16.msra.mxu0 %v500
    %618 = vmatprep.subr.bf16.mxu0 %v505
    %619 = vmatpush1.bf16.msra.mxu0 %v504
    %620 = vmatprep.subr.bf16.mxu0 %v509
    %621 = vmatpush1.bf16.msra.mxu0 %v508
    %622 = vmatprep.subr.bf16.mxu0 %v513
    %623 = vmatpush1.bf16.msra.mxu0 %v512
    %624 = vmatprep.subr.bf16.mxu0 %v517
    %625 = vmatpush1.bf16.msra.mxu0 %v516
    %626 = vmatprep.subr.bf16.mxu0 %v521
    %627 = vmatpush1.bf16.msra.mxu0 %v520
    %628 = vmatprep.subr.bf16.mxu0 %v525
    %629 = vmatpush1.bf16.msra.mxu0 %v524
    %630 = vmatprep.subr.bf16.mxu0 %v529
    %631 = vmatpush1.bf16.msra.mxu0 %v528
    %632 = vmatprep.subr.bf16.mxu0 %v533
    %633 = vmatpush1.bf16.msra.mxu0 %v532
    %634 = vmatprep.subr.bf16.mxu0 %v537
    %635 = vmatpush1.bf16.msra.mxu0 %v536
    %636 = vmatprep.mubr.bf16.mxu0 %v197
    %637 = vmatmul.mubr.bf16.gmra.mrb[0].mxu0 %v196
    %v638 = vpop.f32.mrb[0].mxu0
    %v639 = vadd.f32 %v267, %v638
    %v640 = vpop.f32.mrb[0].mxu0
    %v641 = vadd.f32 %v271, %v640
    %v642 = vpop.f32.mrb[0].mxu0
    %v643 = vadd.f32 %v267, %v642
    %v644 = vpop.f32.mrb[0].mxu0
    %v645 = vadd.f32 %v271, %v644
    %646 = vdwg.mxu0
    %647 = vmatprep.subr.bf16.mxu0 %v479
    %648 = vmatpush1.bf16.msra.mxu0 %v478
    %649 = vmatprep.subr.bf16.mxu0 %v483
    %650 = vmatpush1.bf16.msra.mxu0 %v482
    %651 = vmatprep.subr.bf16.mxu0 %v487
    %652 = vmatpush1.bf16.msra.mxu0 %v486
    %653 = vmatprep.subr.bf16.mxu0 %v491
    %654 = vmatpush1.bf16.msra.mxu0 %v490
    %655 = vmatprep.subr.bf16.mxu0 %v495
    %656 = vmatpush1.bf16.msra.mxu0 %v494
    %657 = vmatprep.subr.bf16.mxu0 %v499
    %658 = vmatpush1.bf16.msra.mxu0 %v498
    %659 = vmatprep.subr.bf16.mxu0 %v503
    %660 = vmatpush1.bf16.msra.mxu0 %v502
    %661 = vmatprep.subr.bf16.mxu0 %v507
    %662 = vmatpush1.bf16.msra.mxu0 %v506
    %663 = vmatprep.subr.bf16.mxu0 %v511
    %664 = vmatpush1.bf16.msra.mxu0 %v510
    %665 = vmatprep.subr.bf16.mxu0 %v515
    %666 = vmatpush1.bf16.msra.mxu0 %v514
    %667 = vmatprep.subr.bf16.mxu0 %v519
    %668 = vmatpush1.bf16.msra.mxu0 %v518
    %669 = vmatprep.subr.bf16.mxu0 %v523
    %670 = vmatpush1.bf16.msra.mxu0 %v522
    %671 = vmatprep.subr.bf16.mxu0 %v527
    %672 = vmatpush1.bf16.msra.mxu0 %v526
    %673 = vmatprep.subr.bf16.mxu0 %v531
    %674 = vmatpush1.bf16.msra.mxu0 %v530
    %675 = vmatprep.subr.bf16.mxu0 %v535
    %676 = vmatpush1.bf16.msra.mxu0 %v534
    %677 = vmatprep.subr.bf16.mxu0 %v539
    %678 = vmatpush1.bf16.msra.mxu0 %v538
    %679 = vmatprep.mubr.bf16.mxu0 %v197
    %680 = vmatmul.mubr.bf16.gmra.mrb[0].mxu0 %v196
    %v681 = vpop.f32.mrb[0].mxu0
    %v682 = vadd.f32 %v275, %v681
    %v683 = vpop.f32.mrb[0].mxu0
    %v684 = vadd.f32 %v279, %v683
    %v685 = vpop.f32.mrb[0].mxu0
    %v686 = vadd.f32 %v275, %v685
    %v687 = vpop.f32.mrb[0].mxu0
    %v688 = vadd.f32 %v279, %v687
    %689 = vdwg.mxu0
    %v690 = vld [vmem:[#allocation12] sm:$0xff]
    %692 = vset.pattern.permute.xlu0 0
    %693 = vperm.xlu0 %692, %v690
    %v694 = vpop.permute.xlu0 %693
    %v696 = vmul.f32 %v682, %v694
    %v697 = vmul.f32 %v684, %v694
    %v698 = vmul.f32 %v686, %v694
    %v699 = vmul.f32 %v688, %v694
    %v700 = vrot.slane %v696, 4
    %v701 = vadd.f32 %v696, %v700
    %v702 = vrot.slane %v701, 2
    %v703 = vadd.f32 %v701, %v702
    %v704 = vrot.slane %v703, 1
    %v705 = vadd.f32 %v703, %v704
    %v706 = vrot.slane %v697, 4
    %v707 = vadd.f32 %v697, %v706
    %v708 = vrot.slane %v707, 2
    %v709 = vadd.f32 %v707, %v708
    %v710 = vrot.slane %v709, 1
    %v711 = vadd.f32 %v709, %v710
    %v712 = vrot.slane %v698, 4
    %v713 = vadd.f32 %v698, %v712
    %v714 = vrot.slane %v713, 2
    %v715 = vadd.f32 %v713, %v714
    %v716 = vrot.slane %v715, 1
    %v717 = vadd.f32 %v715, %v716
    %v718 = vrot.slane %v699, 4
    %v719 = vadd.f32 %v699, %v718
    %v720 = vrot.slane %v719, 2
    %v721 = vadd.f32 %v719, %v720
    %v722 = vrot.slane %v721, 1
    %v723 = vadd.f32 %v721, %v722
    %v724 = vmul.f32 %v639, %v705
    %v725 = vmul.f32 %v641, %v711
    %v726 = vmul.f32 %v643, %v717
    %v727 = vmul.f32 %v645, %v723
    %v728 = vadd.f32 %v724, %v725
    %729 = vadd.xlane.f32.xlu0 %v728
    %v730 = vpop.xlane.xlu0 %729
    %v731 = vadd.f32 %v726, %v727
    %732 = vadd.xlane.f32.xlu0 %v731
    %v733 = vpop.xlane.xlu0 %732
    %v734 = vld [vmem:[#allocation2] sm:$0x1]
    %v736 = vlaneseq
    %v737 = vshrl.u32 %v736, 7
    %v738 = vsub.s32 0, %v737
    %v739 = vrot.slane %v734, %v738
    %740 = vset.pattern.permute.xlu0 0
    %741 = vperm.xlu0 %740, %v739
    %v742 = vpop.permute.xlu0 %741
    %v744 = vadd.f32 %v730, %v742
    %v745 = vadd.f32 %v733, %v742
    %v748 = vlaneseq
    %v749 = vand.u32 %v748, 127
    %v750 = vlaneseq
    %v751 = vshrl.u32 %v750, 7
    %v752 = vsub.s32 %v749, %v751
    %v753 = vrot.slane %v744, %v752
    %v754 = vlaneseq
    %v755 = vshrl.u32 %v754, 7
    %v756 = vsub.s32 %v749, %v755
    %v757 = vrot.slane %v745, %v756
    %vm758 = vcmask 1041409
    %v759 = vsel %vm758, %v757, %v753
    %vm761 = vcmask 58368
    %762 = vst.msk [vmem:[#allocation14] sm:$0x3] %vm761, %v759
    // Predicated region
    $region54: #{tpu_custom_call.1} parent=1 // pred_check
      _
    $region55: #{tpu_custom_call.1} parent=1 // pred_check_branch
      %764 = sbr.rel (0) target = $region57
    $region56: #{tpu_custom_call.1} parent=1 // pred_region
      %s766 = ssub.s32 32, 32
      %767 = vsyncadd [#allocation5], %s766
      %s769 = sshll.u32 [#allocation14], 4
      %s770 = int_to_ptr.vmem [resolvable:$true] %s769
      %772 = dma.vmem_to_hbm [thread:$0]  %s770, 32, %s7, [#allocation5]
    $region57: #{tpu_custom_call.1} parent=1 // pred_fallthru
      _
    // Predicated region
    $region58: #{tpu_custom_call.1} parent=1 // pred_check
      _
    $region59: #{tpu_custom_call.1} parent=1 // pred_check_branch
      %774 = sbr.rel (0) target = $region61
    $region60: #{tpu_custom_call.1} parent=1 // pred_region
      %775 = dma.done [#allocation5], 32
    $region61: #{tpu_custom_call.1} parent=1 // pred_fallthru
      _
    %776 = vsyncpa [#allocation4], 1
    %777 = vsyncpa [#allocation7], 1
    %778 = vsyncpa [#allocation10], 1
    %779 = vsyncpa [#allocation13], 1
    %780 = vsyncpa [#allocation5], 1

</llo_original>
